<compile_context>
chip_gen: v6e
topology: v6e:2x2x1
jax: 0.10.0
libtpu: 0.0.40
codegen_flags: <defaults>
</compile_context>

<pallas_src>
import functools

import jax
import jax.numpy as jnp
from jax.experimental import pallas as pl
from jax.experimental.pallas import tpu as pltpu

# Module hyper-parameters (consistent with the PyTorch module's __init__).
WIDTH = 16
HEIGHT = 16
CHANNELS = 3
CLASSES = 10
IN_SIZE = WIDTH * HEIGHT * CHANNELS  # 768
BATCH = 2

SUBLANE = 8
LANE = 128
PADDED_CLASSES = 128   # lane-dense output width (use 256 on v7x to fill 2x256 MXU)
DEFAULT_TM = 128       # batch tile for the gridded path (safe well under v7x 64 MiB VMEM)


def _svm_kernel(x_ref, wt_ref, b_ref, o_ref):
    # x_ref : (TM, IN_SIZE)                x tile (f32 or bf16) in VMEM
    # wt_ref: (IN_SIZE, PADDED_CLASSES)    pre-transposed, zero-padded W in VMEM
    # b_ref : (1, PADDED_CLASSES)          zero-padded bias in VMEM
    # o_ref : (TM, PADDED_CLASSES)         f32 output tile in VMEM (lane-dense store)
    acc = jnp.dot(x_ref[...], wt_ref[...], preferred_element_type=jnp.float32)
    o_ref[...] = (acc + b_ref[...]).astype(o_ref.dtype)


def prepare_params(weight, bias, padded_classes=PADDED_CLASSES,
                   param_dtype=jnp.float32):
    """One-time parameter prep: transpose W and zero-pad to a lane-dense width.

    weight: (CLASSES, IN_SIZE), bias: (CLASSES,).
    Returns wt_pad: (IN_SIZE, padded_classes), b_pad: (1, padded_classes).
    Use param_dtype=jnp.bfloat16 on v6e/v7x for 2x MXU throughput on real batches.
    """
    classes, _ = weight.shape
    pad_c = padded_classes - classes
    wt_pad = jnp.pad(weight.T.astype(param_dtype), ((0, 0), (0, pad_c)))
    b_pad = jnp.pad(bias.astype(jnp.float32).reshape(1, classes),
                    ((0, 0), (0, pad_c)))
    return wt_pad, b_pad


@functools.partial(jax.jit, static_argnames=("classes", "tm"))
def linear_svm_forward(x2d, wt_pad, b_pad, *, classes=CLASSES, tm=DEFAULT_TM):
    """x2d: (B, IN_SIZE); wt_pad/b_pad from prepare_params. Returns (B, classes) f32."""
    B, in_size = x2d.shape
    padded_classes = wt_pad.shape[1]

    # Cast activations to the (possibly bf16) parameter dtype for the MXU.
    x = x2d.astype(wt_pad.dtype)

    # Batch tile: multiple of 8 sublanes, no larger than needed for this batch.
    tm = min(tm, max(SUBLANE, pl.cdiv(B, SUBLANE) * SUBLANE))
    b_padded = pl.cdiv(B, tm) * tm
    if b_padded != B:
        x = jnp.pad(x, ((0, b_padded - B), (0, 0)))
    grid = (b_padded // tm,)

    itemsize = jnp.dtype(wt_pad.dtype).itemsize
    cost = pl.CostEstimate(
        flops=2 * b_padded * in_size * padded_classes,
        transcendentals=0,
        bytes_accessed=(b_padded * in_size * itemsize
                        + in_size * padded_classes * itemsize
                        + b_padded * padded_classes * 4),
    )

    out_padded = pl.pallas_call(
        _svm_kernel,
        out_shape=jax.ShapeDtypeStruct((b_padded, padded_classes), jnp.float32),
        grid_spec=pltpu.PrefetchScalarGridSpec(
            num_scalar_prefetch=0,
            grid=grid,
            in_specs=[
                pl.BlockSpec((tm, in_size), lambda i: (i, 0),
                             memory_space=pltpu.MemorySpace.VMEM),
                pl.BlockSpec((in_size, padded_classes), lambda i: (0, 0),
                             memory_space=pltpu.MemorySpace.VMEM),
                pl.BlockSpec((1, padded_classes), lambda i: (0, 0),
                             memory_space=pltpu.MemorySpace.VMEM),
            ],
            out_specs=pl.BlockSpec((tm, padded_classes), lambda i: (i, 0),
                                   memory_space=pltpu.MemorySpace.VMEM),
        ),
        compiler_params=pltpu.CompilerParams(
            dimension_semantics=("parallel",),
        ),
        cost_estimate=cost,
    )(x, wt_pad, b_pad)

    # Drop batch/class padding (padded W/b columns are zero, so no garbage leaks).
    return out_padded[:B, :classes]


if __name__ == "__main__":
    key = jax.random.PRNGKey(0)
    k_x, k_w, k_b = jax.random.split(key, 3)

    # Deterministic init mimicking nn.Linear default: U(-1/sqrt(in), 1/sqrt(in)).
    bound = 1.0 / (IN_SIZE ** 0.5)
    weight = jax.random.uniform(
        k_w, (CLASSES, IN_SIZE), jnp.float32, minval=-bound, maxval=bound)
    bias = jax.random.uniform(
        k_b, (CLASSES,), jnp.float32, minval=-bound, maxval=bound)

    # One-time parameter prep (transpose + pad done here, NOT per forward call).
    wt_pad, b_pad = prepare_params(weight, bias)

    # Example input: NCHW image flattened like PyTorch x.view(B, -1).
    x_nchw = jax.random.normal(k_x, (BATCH, CHANNELS, HEIGHT, WIDTH), jnp.float32)
    x2d = x_nchw.reshape(BATCH, IN_SIZE)

    out = linear_svm_forward(x2d, wt_pad, b_pad)
    jax.block_until_ready(out)

    # Sanity check against plain-JAX reference.
    ref = x2d @ weight.T + bias
    assert out.shape == (BATCH, CLASSES)
    assert jnp.allclose(out, ref, atol=1e-5, rtol=1e-5)

    print("KERNEL_OK")
</pallas_src>

<mosaic_0001>
module attributes {stable_mosaic.version = 11 : i64} {
  func.func @_svm_kernel(%arg0: i32, %arg1: memref<8x768xf32, #tpu.memory_space<vmem>>, %arg2: memref<768x128xf32, #tpu.memory_space<vmem>>, %arg3: memref<1x128xf32, #tpu.memory_space<vmem>>, %arg4: memref<8x128xf32, #tpu.memory_space<vmem>>) attributes {dimension_semantics = [#tpu.dimension_semantics<parallel>], iteration_bounds = array<i64: 1>, scalar_prefetch = 0 : i64, scratch_operands = 0 : i64, tpu.core_type = #tpu.core_type<tc>, window_params = [{transform_indices = @transform_0, window_bounds = array<i64: 8, 768>}, {pipeline_mode = #tpu.pipeline_mode<synchronous>, transform_indices = @transform_1, window_bounds = array<i64: 768, 128>}, {pipeline_mode = #tpu.pipeline_mode<synchronous>, transform_indices = @transform_2, window_bounds = array<i64: 1, 128>}, {transform_indices = @transform_3, window_bounds = array<i64: 8, 128>}]} {
    %c0 = arith.constant 0 : index
    %c0_0 = arith.constant 0 : index
    %0 = vector.load %arg1[%c0, %c0_0] : memref<8x768xf32, #tpu.memory_space<vmem>>, vector<8x768xf32>
    %c0_1 = arith.constant 0 : index
    %c0_2 = arith.constant 0 : index
    %1 = vector.load %arg2[%c0_1, %c0_2] : memref<768x128xf32, #tpu.memory_space<vmem>>, vector<768x128xf32>
    %cst = arith.constant dense<0.000000e+00> : vector<8x128xf32>
    %2 = tpu.matmul %0, %1, %cst {dimension_numbers = #tpu.dot_dimension_numbers<[1], [0], [0], [1], [0, 0, 1, 1], [], []>} : vector<8x768xf32>, vector<768x128xf32>, vector<8x128xf32> -> vector<8x128xf32>
    %c0_3 = arith.constant 0 : index
    %c0_4 = arith.constant 0 : index
    %3 = vector.load %arg3[%c0_3, %c0_4] : memref<1x128xf32, #tpu.memory_space<vmem>>, vector<1x128xf32>
    %4 = vector.broadcast %3 : vector<1x128xf32> to vector<8x128xf32>
    %5 = arith.addf %2, %4 : vector<8x128xf32>
    %c0_5 = arith.constant 0 : index
    %c0_6 = arith.constant 0 : index
    %6 = vector.load %arg4[%c0_5, %c0_6] : memref<8x128xf32, #tpu.memory_space<vmem>>, vector<8x128xf32>
    tpu.vector_store %arg4[%c0_5, %c0_6], %5 {strides = array<i32>} : memref<8x128xf32, #tpu.memory_space<vmem>>, vector<8x128xf32>,
    return
  }
  func.func @transform_0(%arg0: i32) -> (i32, i32) {
    %c0_i32 = arith.constant 0 : i32
    %c0_i32_0 = arith.constant 0 : i32
    return %arg0, %c0_i32 : i32, i32
  }
  func.func @transform_1(%arg0: i32) -> (i32, i32) {
    %c0_i32 = arith.constant 0 : i32
    %c0_i32_0 = arith.constant 0 : i32
    %c0_i32_1 = arith.constant 0 : i32
    return %c0_i32, %c0_i32_0 : i32, i32
  }
  func.func @transform_2(%arg0: i32) -> (i32, i32) {
    %c0_i32 = arith.constant 0 : i32
    %c0_i32_0 = arith.constant 0 : i32
    %c0_i32_1 = arith.constant 0 : i32
    return %c0_i32, %c0_i32_0 : i32, i32
  }
  func.func @transform_3(%arg0: i32) -> (i32, i32) {
    %c0_i32 = arith.constant 0 : i32
    %c0_i32_0 = arith.constant 0 : i32
    return %arg0, %c0_i32 : i32, i32
  }
}

</mosaic_0001>

<llo_original>
// kernel: linear_svm_forward.1
$region0: #{linear_svm_forward.1}
  #allocation0 [shape = 'u32[]', space=smem, size = 0x4, offset = 0x4, fixed_abs, tag = 'smem constant byte address 0x4 - core index']
  #allocation1 [shape = 'u32[144,128]{1,0:T(1,128)}', space=vmem, size = 0x12000, scoped, tag = 'internal scratch']
  %s0 = inlined_call_operand.vmem [shape: f32[8,768], index: 0, kind: input, shape index: {}]
  %s1 = inlined_call_operand.hbm [shape: f32[768,128], index: 1, kind: input, shape index: {}]
  %s2 = inlined_call_operand.vmem [shape: f32[1,128], index: 2, kind: input, shape index: {}]
  %s3 = inlined_call_operand.vmem [shape: f32[8,128], index: 3, kind: output, shape index: {}]
  %s4 = sld [smem:[#allocation0]]
  $region26: #{linear_svm_forward.1} parent=0
    _
  %s6 = ssub.s32 1, %s4
  %s7 = scalar_select 0, %s6, %s4
  $region1: #{linear_svm_forward.1} parent=0
    #allocation2 [shape = 'u8[393216]{0}', space=vmem, size = 0x60000, scoped, tag = 'input window, operand 1, single buffered']
    #allocation3 [shape = 's32[1]{0}', space=sflag, size = 0x4, scoped, tag = 'scoped memory for linear_svm_forward.1']
    %8 = vsyncpa [#allocation3], 0
    // Predicated region
    $region2: #{linear_svm_forward.1} parent=1 // pred_check
      _
    $region3: #{linear_svm_forward.1} parent=1 // pred_check_branch
      %10 = sbr.rel (0) target = $region5
    $region4: #{linear_svm_forward.1} parent=1 // pred_region
      _
    $region5: #{linear_svm_forward.1} parent=1 // pred_fallthru
      _
    // Predicated region
    $region6: #{linear_svm_forward.1} parent=1 // pred_check
      _
    $region7: #{linear_svm_forward.1} parent=1 // pred_check_branch
      %12 = sbr.rel (0) target = $region9
    $region8: #{linear_svm_forward.1} parent=1 // pred_region
      %s14 = ssub.s32 12288, 12288
      %15 = vsyncadd [#allocation3], %s14
      %s16 = sshll.u32 [#allocation2], 4
      %s17 = int_to_ptr.vmem [resolvable:$true] %s16
      %22 = dma.hbm_to_vmem [thread:$0]  %s1, 12288, %s17, [#allocation3], 128, 128, 8
    $region9: #{linear_svm_forward.1} parent=1 // pred_fallthru
      _
    // Predicated region
    $region10: #{linear_svm_forward.1} parent=1 // pred_check
      _
    $region11: #{linear_svm_forward.1} parent=1 // pred_check_branch
      %24 = sbr.rel (0) target = $region13
    $region12: #{linear_svm_forward.1} parent=1 // pred_region
      _
    $region13: #{linear_svm_forward.1} parent=1 // pred_fallthru
      _
    // Predicated region
    $region14: #{linear_svm_forward.1} parent=1 // pred_check
      _
    $region15: #{linear_svm_forward.1} parent=1 // pred_check_branch
      %26 = sbr.rel (0) target = $region17
    $region16: #{linear_svm_forward.1} parent=1 // pred_region
      %27 = dma.done [#allocation3], 12288
    $region17: #{linear_svm_forward.1} parent=1 // pred_fallthru
      _
    %v28 = vld [vmem:[%s0] sm:$0xff]
    %v29 = vld [vmem:[%s0 + $0x8] sm:$0xff]
    %v30 = vld [vmem:[%s0 + $0x10] sm:$0xff]
    %v31 = vld [vmem:[%s0 + $0x18] sm:$0xff]
    %v32 = vld [vmem:[%s0 + $0x20] sm:$0xff]
    %v33 = vld [vmem:[%s0 + $0x28] sm:$0xff]
    %v34 = vld [vmem:[#allocation2] sm:$0xff]
    %v35 = vld [vmem:[#allocation2 + $0x8] sm:$0xff]
    %v36 = vld [vmem:[#allocation2 + $0x10] sm:$0xff]
    %v37 = vld [vmem:[#allocation2 + $0x18] sm:$0xff]
    %v38 = vld [vmem:[#allocation2 + $0x20] sm:$0xff]
    %v39 = vld [vmem:[#allocation2 + $0x28] sm:$0xff]
    %v40 = vld [vmem:[#allocation2 + $0x30] sm:$0xff]
    %v41 = vld [vmem:[#allocation2 + $0x38] sm:$0xff]
    %v42 = vld [vmem:[#allocation2 + $0x40] sm:$0xff]
    %v43 = vld [vmem:[#allocation2 + $0x48] sm:$0xff]
    %v44 = vld [vmem:[#allocation2 + $0x50] sm:$0xff]
    %v45 = vld [vmem:[#allocation2 + $0x58] sm:$0xff]
    %v46 = vld [vmem:[#allocation2 + $0x60] sm:$0xff]
    %v47 = vld [vmem:[#allocation2 + $0x68] sm:$0xff]
    %v48 = vld [vmem:[#allocation2 + $0x70] sm:$0xff]
    %v49 = vld [vmem:[#allocation2 + $0x78] sm:$0xff]
    %v50 = vld [vmem:[#allocation2 + $0x80] sm:$0xff]
    %v51 = vld [vmem:[#allocation2 + $0x88] sm:$0xff]
    %v52 = vld [vmem:[#allocation2 + $0x90] sm:$0xff]
    %v53 = vld [vmem:[#allocation2 + $0x98] sm:$0xff]
    %v54 = vld [vmem:[#allocation2 + $0xa0] sm:$0xff]
    %v55 = vld [vmem:[#allocation2 + $0xa8] sm:$0xff]
    %v56 = vld [vmem:[#allocation2 + $0xb0] sm:$0xff]
    %v57 = vld [vmem:[#allocation2 + $0xb8] sm:$0xff]
    %v58 = vld [vmem:[#allocation2 + $0xc0] sm:$0xff]
    %v59 = vld [vmem:[#allocation2 + $0xc8] sm:$0xff]
    %v60 = vld [vmem:[#allocation2 + $0xd0] sm:$0xff]
    %v61 = vld [vmem:[#allocation2 + $0xd8] sm:$0xff]
    %v62 = vld [vmem:[#allocation2 + $0xe0] sm:$0xff]
    %v63 = vld [vmem:[#allocation2 + $0xe8] sm:$0xff]
    %v64 = vld [vmem:[#allocation2 + $0xf0] sm:$0xff]
    %v65 = vld [vmem:[#allocation2 + $0xf8] sm:$0xff]
    %v66 = vld [vmem:[#allocation2 + $0x100] sm:$0xff]
    %v67 = vld [vmem:[#allocation2 + $0x108] sm:$0xff]
    %v68 = vld [vmem:[#allocation2 + $0x110] sm:$0xff]
    %v69 = vld [vmem:[#allocation2 + $0x118] sm:$0xff]
    %v70 = vld [vmem:[#allocation2 + $0x120] sm:$0xff]
    %v71 = vld [vmem:[#allocation2 + $0x128] sm:$0xff]
    %v72 = vld [vmem:[#allocation2 + $0x130] sm:$0xff]
    %v73 = vld [vmem:[#allocation2 + $0x138] sm:$0xff]
    %v74 = vld [vmem:[#allocation2 + $0x140] sm:$0xff]
    %v75 = vld [vmem:[#allocation2 + $0x148] sm:$0xff]
    %v76 = vld [vmem:[#allocation2 + $0x150] sm:$0xff]
    %v77 = vld [vmem:[#allocation2 + $0x158] sm:$0xff]
    %v78 = vld [vmem:[#allocation2 + $0x160] sm:$0xff]
    %v79 = vld [vmem:[#allocation2 + $0x168] sm:$0xff]
    %v80 = vld [vmem:[#allocation2 + $0x170] sm:$0xff]
    %v81 = vld [vmem:[#allocation2 + $0x178] sm:$0xff]
    %v82 = vld [vmem:[#allocation2 + $0x180] sm:$0xff]
    %v83 = vld [vmem:[#allocation2 + $0x188] sm:$0xff]
    %v84 = vld [vmem:[#allocation2 + $0x190] sm:$0xff]
    %v85 = vld [vmem:[#allocation2 + $0x198] sm:$0xff]
    %v86 = vld [vmem:[#allocation2 + $0x1a0] sm:$0xff]
    %v87 = vld [vmem:[#allocation2 + $0x1a8] sm:$0xff]
    %v88 = vld [vmem:[#allocation2 + $0x1b0] sm:$0xff]
    %v89 = vld [vmem:[#allocation2 + $0x1b8] sm:$0xff]
    %v90 = vld [vmem:[#allocation2 + $0x1c0] sm:$0xff]
    %v91 = vld [vmem:[#allocation2 + $0x1c8] sm:$0xff]
    %v92 = vld [vmem:[#allocation2 + $0x1d0] sm:$0xff]
    %v93 = vld [vmem:[#allocation2 + $0x1d8] sm:$0xff]
    %v94 = vld [vmem:[#allocation2 + $0x1e0] sm:$0xff]
    %v95 = vld [vmem:[#allocation2 + $0x1e8] sm:$0xff]
    %v96 = vld [vmem:[#allocation2 + $0x1f0] sm:$0xff]
    %v97 = vld [vmem:[#allocation2 + $0x1f8] sm:$0xff]
    %v98 = vld [vmem:[#allocation2 + $0x200] sm:$0xff]
    %v99 = vld [vmem:[#allocation2 + $0x208] sm:$0xff]
    %v100 = vld [vmem:[#allocation2 + $0x210] sm:$0xff]
    %v101 = vld [vmem:[#allocation2 + $0x218] sm:$0xff]
    %v102 = vld [vmem:[#allocation2 + $0x220] sm:$0xff]
    %v103 = vld [vmem:[#allocation2 + $0x228] sm:$0xff]
    %v104 = vld [vmem:[#allocation2 + $0x230] sm:$0xff]
    %v105 = vld [vmem:[#allocation2 + $0x238] sm:$0xff]
    %v106 = vld [vmem:[#allocation2 + $0x240] sm:$0xff]
    %v107 = vld [vmem:[#allocation2 + $0x248] sm:$0xff]
    %v108 = vld [vmem:[#allocation2 + $0x250] sm:$0xff]
    %v109 = vld [vmem:[#allocation2 + $0x258] sm:$0xff]
    %v110 = vld [vmem:[#allocation2 + $0x260] sm:$0xff]
    %v111 = vld [vmem:[#allocation2 + $0x268] sm:$0xff]
    %v112 = vld [vmem:[#allocation2 + $0x270] sm:$0xff]
    %v113 = vld [vmem:[#allocation2 + $0x278] sm:$0xff]
    %v114 = vld [vmem:[#allocation2 + $0x280] sm:$0xff]
    %v115 = vld [vmem:[#allocation2 + $0x288] sm:$0xff]
    %v116 = vld [vmem:[#allocation2 + $0x290] sm:$0xff]
    %v117 = vld [vmem:[#allocation2 + $0x298] sm:$0xff]
    %v118 = vld [vmem:[#allocation2 + $0x2a0] sm:$0xff]
    %v119 = vld [vmem:[#allocation2 + $0x2a8] sm:$0xff]
    %v120 = vld [vmem:[#allocation2 + $0x2b0] sm:$0xff]
    %v121 = vld [vmem:[#allocation2 + $0x2b8] sm:$0xff]
    %v122 = vld [vmem:[#allocation2 + $0x2c0] sm:$0xff]
    %v123 = vld [vmem:[#allocation2 + $0x2c8] sm:$0xff]
    %v124 = vld [vmem:[#allocation2 + $0x2d0] sm:$0xff]
    %v125 = vld [vmem:[#allocation2 + $0x2d8] sm:$0xff]
    %v126 = vld [vmem:[#allocation2 + $0x2e0] sm:$0xff]
    %v127 = vld [vmem:[#allocation2 + $0x2e8] sm:$0xff]
    %v128 = vld [vmem:[#allocation2 + $0x2f0] sm:$0xff]
    %v129 = vld [vmem:[#allocation2 + $0x2f8] sm:$0xff]
    %v130 = vld [vmem:[%s2] sm:$0x1]
    %v132 = vlaneseq
    %v133 = vshrl.u32 %v132, 7
    %v134 = vsub.s32 0, %v133
    %v135 = vrot.slane %v130, %v134
    %137 = vmatprep.subr.mxu0 0.0
    %138 = vmatpush1.msra.mxu0 %v49
    %139 = vmatprep.subr.mxu0 0.0
    %140 = vmatpush1.msra.mxu0 %v48
    %141 = vmatprep.subr.mxu0 0.0
    %142 = vmatpush1.msra.mxu0 %v47
    %143 = vmatprep.subr.mxu0 0.0
    %144 = vmatpush1.msra.mxu0 %v46
    %145 = vmatprep.subr.mxu0 0.0
    %146 = vmatpush1.msra.mxu0 %v45
    %147 = vmatprep.subr.mxu0 0.0
    %148 = vmatpush1.msra.mxu0 %v44
    %149 = vmatprep.subr.mxu0 0.0
    %150 = vmatpush1.msra.mxu0 %v43
    %151 = vmatprep.subr.mxu0 0.0
    %152 = vmatpush1.msra.mxu0 %v42
    %153 = vmatprep.subr.mxu0 0.0
    %154 = vmatpush1.msra.mxu0 %v41
    %155 = vmatprep.subr.mxu0 0.0
    %156 = vmatpush1.msra.mxu0 %v40
    %157 = vmatprep.subr.mxu0 0.0
    %158 = vmatpush1.msra.mxu0 %v39
    %159 = vmatprep.subr.mxu0 0.0
    %160 = vmatpush1.msra.mxu0 %v38
    %161 = vmatprep.subr.mxu0 0.0
    %162 = vmatpush1.msra.mxu0 %v37
    %163 = vmatprep.subr.mxu0 0.0
    %164 = vmatpush1.msra.mxu0 %v36
    %165 = vmatprep.subr.mxu0 0.0
    %166 = vmatpush1.msra.mxu0 %v35
    %167 = vmatprep.subr.mxu0 0.0
    %168 = vmatpush1.msra.mxu0 %v34
    %169 = vmatprep.subr.mxu0 0.0
    %170 = vmatpush2.msra.mxu0 %v65
    %171 = vmatprep.subr.mxu0 0.0
    %172 = vmatpush2.msra.mxu0 %v64
    %173 = vmatprep.subr.mxu0 0.0
    %174 = vmatpush2.msra.mxu0 %v63
    %175 = vmatprep.subr.mxu0 0.0
    %176 = vmatpush2.msra.mxu0 %v62
    %177 = vmatprep.subr.mxu0 0.0
    %178 = vmatpush2.msra.mxu0 %v61
    %179 = vmatprep.subr.mxu0 0.0
    %180 = vmatpush2.msra.mxu0 %v60
    %181 = vmatprep.subr.mxu0 0.0
    %182 = vmatpush2.msra.mxu0 %v59
    %183 = vmatprep.subr.mxu0 0.0
    %184 = vmatpush2.msra.mxu0 %v58
    %185 = vmatprep.subr.mxu0 0.0
    %186 = vmatpush2.msra.mxu0 %v57
    %187 = vmatprep.subr.mxu0 0.0
    %188 = vmatpush2.msra.mxu0 %v56
    %189 = vmatprep.subr.mxu0 0.0
    %190 = vmatpush2.msra.mxu0 %v55
    %191 = vmatprep.subr.mxu0 0.0
    %192 = vmatpush2.msra.mxu0 %v54
    %193 = vmatprep.subr.mxu0 0.0
    %194 = vmatpush2.msra.mxu0 %v53
    %195 = vmatprep.subr.mxu0 0.0
    %196 = vmatpush2.msra.mxu0 %v52
    %197 = vmatprep.subr.mxu0 0.0
    %198 = vmatpush2.msra.mxu0 %v51
    %199 = vmatprep.subr.mxu0 0.0
    %200 = vmatpush2.msra.mxu0 %v50
    %201 = vmatprep.mubr.f32.mxu0 %v29
    %202 = vmatmul.mubr.f32.gmra.mxu0 %v28
    %v203 = vpop.f32.mrf.mxu0
    %v204 = vadd.f32 %v135, %v203
    %v205 = vpop.f32.mrf.mxu0
    %206 = vdwg.mxu0
    %207 = vmatprep.subr.mxu0 0.0
    %208 = vmatpush1.msra.mxu0 %v81
    %209 = vmatprep.subr.mxu0 0.0
    %210 = vmatpush1.msra.mxu0 %v80
    %211 = vmatprep.subr.mxu0 0.0
    %212 = vmatpush1.msra.mxu0 %v79
    %213 = vmatprep.subr.mxu0 0.0
    %214 = vmatpush1.msra.mxu0 %v78
    %215 = vmatprep.subr.mxu0 0.0
    %216 = vmatpush1.msra.mxu0 %v77
    %217 = vmatprep.subr.mxu0 0.0
    %218 = vmatpush1.msra.mxu0 %v76
    %219 = vmatprep.subr.mxu0 0.0
    %220 = vmatpush1.msra.mxu0 %v75
    %221 = vmatprep.subr.mxu0 0.0
    %222 = vmatpush1.msra.mxu0 %v74
    %223 = vmatprep.subr.mxu0 0.0
    %224 = vmatpush1.msra.mxu0 %v73
    %225 = vmatprep.subr.mxu0 0.0
    %226 = vmatpush1.msra.mxu0 %v72
    %227 = vmatprep.subr.mxu0 0.0
    %228 = vmatpush1.msra.mxu0 %v71
    %229 = vmatprep.subr.mxu0 0.0
    %230 = vmatpush1.msra.mxu0 %v70
    %231 = vmatprep.subr.mxu0 0.0
    %232 = vmatpush1.msra.mxu0 %v69
    %233 = vmatprep.subr.mxu0 0.0
    %234 = vmatpush1.msra.mxu0 %v68
    %235 = vmatprep.subr.mxu0 0.0
    %236 = vmatpush1.msra.mxu0 %v67
    %237 = vmatprep.subr.mxu0 0.0
    %238 = vmatpush1.msra.mxu0 %v66
    %239 = vmatprep.subr.mxu0 0.0
    %240 = vmatpush2.msra.mxu0 %v97
    %241 = vmatprep.subr.mxu0 0.0
    %242 = vmatpush2.msra.mxu0 %v96
    %243 = vmatprep.subr.mxu0 0.0
    %244 = vmatpush2.msra.mxu0 %v95
    %245 = vmatprep.subr.mxu0 0.0
    %246 = vmatpush2.msra.mxu0 %v94
    %247 = vmatprep.subr.mxu0 0.0
    %248 = vmatpush2.msra.mxu0 %v93
    %249 = vmatprep.subr.mxu0 0.0
    %250 = vmatpush2.msra.mxu0 %v92
    %251 = vmatprep.subr.mxu0 0.0
    %252 = vmatpush2.msra.mxu0 %v91
    %253 = vmatprep.subr.mxu0 0.0
    %254 = vmatpush2.msra.mxu0 %v90
    %255 = vmatprep.subr.mxu0 0.0
    %256 = vmatpush2.msra.mxu0 %v89
    %257 = vmatprep.subr.mxu0 0.0
    %258 = vmatpush2.msra.mxu0 %v88
    %259 = vmatprep.subr.mxu0 0.0
    %260 = vmatpush2.msra.mxu0 %v87
    %261 = vmatprep.subr.mxu0 0.0
    %262 = vmatpush2.msra.mxu0 %v86
    %263 = vmatprep.subr.mxu0 0.0
    %264 = vmatpush2.msra.mxu0 %v85
    %265 = vmatprep.subr.mxu0 0.0
    %266 = vmatpush2.msra.mxu0 %v84
    %267 = vmatprep.subr.mxu0 0.0
    %268 = vmatpush2.msra.mxu0 %v83
    %269 = vmatprep.subr.mxu0 0.0
    %270 = vmatpush2.msra.mxu0 %v82
    %271 = vmatprep.mubr.f32.mxu0 %v31
    %272 = vmatmul.mubr.f32.gmra.mxu0 %v30
    %v273 = vpop.f32.mrf.mxu0
    %v274 = vadd.f32 %v204, %v273
    %v275 = vpop.f32.mrf.mxu0
    %276 = vdwg.mxu0
    %277 = vmatprep.subr.mxu0 0.0
    %278 = vmatpush1.msra.mxu0 %v113
    %279 = vmatprep.subr.mxu0 0.0
    %280 = vmatpush1.msra.mxu0 %v112
    %281 = vmatprep.subr.mxu0 0.0
    %282 = vmatpush1.msra.mxu0 %v111
    %283 = vmatprep.subr.mxu0 0.0
    %284 = vmatpush1.msra.mxu0 %v110
    %285 = vmatprep.subr.mxu0 0.0
    %286 = vmatpush1.msra.mxu0 %v109
    %287 = vmatprep.subr.mxu0 0.0
    %288 = vmatpush1.msra.mxu0 %v108
    %289 = vmatprep.subr.mxu0 0.0
    %290 = vmatpush1.msra.mxu0 %v107
    %291 = vmatprep.subr.mxu0 0.0
    %292 = vmatpush1.msra.mxu0 %v106
    %293 = vmatprep.subr.mxu0 0.0
    %294 = vmatpush1.msra.mxu0 %v105
    %295 = vmatprep.subr.mxu0 0.0
    %296 = vmatpush1.msra.mxu0 %v104
    %297 = vmatprep.subr.mxu0 0.0
    %298 = vmatpush1.msra.mxu0 %v103
    %299 = vmatprep.subr.mxu0 0.0
    %300 = vmatpush1.msra.mxu0 %v102
    %301 = vmatprep.subr.mxu0 0.0
    %302 = vmatpush1.msra.mxu0 %v101
    %303 = vmatprep.subr.mxu0 0.0
    %304 = vmatpush1.msra.mxu0 %v100
    %305 = vmatprep.subr.mxu0 0.0
    %306 = vmatpush1.msra.mxu0 %v99
    %307 = vmatprep.subr.mxu0 0.0
    %308 = vmatpush1.msra.mxu0 %v98
    %309 = vmatprep.subr.mxu0 0.0
    %310 = vmatpush2.msra.mxu0 %v129
    %311 = vmatprep.subr.mxu0 0.0
    %312 = vmatpush2.msra.mxu0 %v128
    %313 = vmatprep.subr.mxu0 0.0
    %314 = vmatpush2.msra.mxu0 %v127
    %315 = vmatprep.subr.mxu0 0.0
    %316 = vmatpush2.msra.mxu0 %v126
    %317 = vmatprep.subr.mxu0 0.0
    %318 = vmatpush2.msra.mxu0 %v125
    %319 = vmatprep.subr.mxu0 0.0
    %320 = vmatpush2.msra.mxu0 %v124
    %321 = vmatprep.subr.mxu0 0.0
    %322 = vmatpush2.msra.mxu0 %v123
    %323 = vmatprep.subr.mxu0 0.0
    %324 = vmatpush2.msra.mxu0 %v122
    %325 = vmatprep.subr.mxu0 0.0
    %326 = vmatpush2.msra.mxu0 %v121
    %327 = vmatprep.subr.mxu0 0.0
    %328 = vmatpush2.msra.mxu0 %v120
    %329 = vmatprep.subr.mxu0 0.0
    %330 = vmatpush2.msra.mxu0 %v119
    %331 = vmatprep.subr.mxu0 0.0
    %332 = vmatpush2.msra.mxu0 %v118
    %333 = vmatprep.subr.mxu0 0.0
    %334 = vmatpush2.msra.mxu0 %v117
    %335 = vmatprep.subr.mxu0 0.0
    %336 = vmatpush2.msra.mxu0 %v116
    %337 = vmatprep.subr.mxu0 0.0
    %338 = vmatpush2.msra.mxu0 %v115
    %339 = vmatprep.subr.mxu0 0.0
    %340 = vmatpush2.msra.mxu0 %v114
    %341 = vmatprep.mubr.f32.mxu0 %v33
    %342 = vmatmul.mubr.f32.gmra.mxu0 %v32
    %v343 = vpop.f32.mrf.mxu0
    %v344 = vadd.f32 %v274, %v343
    %v345 = vpop.f32.mrf.mxu0
    %346 = vdwg.mxu0
    %347 = vst [vmem:[%s3] sm:$0xff] %v344
    // Predicated region
    $region18: #{linear_svm_forward.1} parent=1 // pred_check
      _
    $region19: #{linear_svm_forward.1} parent=1 // pred_check_branch
      %349 = sbr.rel (0) target = $region21
    $region20: #{linear_svm_forward.1} parent=1 // pred_region
      _
    $region21: #{linear_svm_forward.1} parent=1 // pred_fallthru
      _
    // Predicated region
    $region22: #{linear_svm_forward.1} parent=1 // pred_check
      _
    $region23: #{linear_svm_forward.1} parent=1 // pred_check_branch
      %351 = sbr.rel (0) target = $region25
    $region24: #{linear_svm_forward.1} parent=1 // pred_region
      _
    $region25: #{linear_svm_forward.1} parent=1 // pred_fallthru
      _
    %352 = vsyncpa [#allocation3], 1

</llo_original>
